<compile_context>
chip_gen: v5e
topology: v5e:2x2
jax: 0.10.0
libtpu: 0.0.40
codegen_flags: <defaults>
</compile_context>

<pallas_src>
import functools

import jax
import jax.numpy as jnp
from jax.experimental import pallas as pl
from jax.experimental.pallas import tpu as pltpu

EPS = 1e-5  # nn.BatchNorm2d default


# ---------------------------------------------------------------------------
# Fused Pallas kernel: pool_h/pool_w + concat + (conv1*BN1 folded) + conv2
# ---------------------------------------------------------------------------
def _coord_pool_mlp_kernel(x_ref, w1_ref, b1_ref, w2_ref, b2_ref, o_ref,
                           pooled_ref, *, C, H, W, TC, KC):
    # x_ref:      (1, TC, H, W)   NCHW tile (one batch element, TC channels)
    # w1_ref:     (mip, C)        conv1 weight with BN1 scale folded in
    # b1_ref:     (mip, 1)        conv1 bias with BN1 folded in
    # w2_ref:     (oup, mip)      conv2 weight
    # b2_ref:     (oup, 1)        conv2 bias
    # o_ref:      (1, oup, H+W)   output block, resident across the C-tile axis
    # pooled_ref: (KC*TC, H+W)    f32 scratch: [:, :H] = pool_h, [:, H:] = pool_w
    k = pl.program_id(1)

    xb = x_ref[0].astype(jnp.float32)                 # (TC, H, W)
    row_mean = jnp.sum(xb, axis=2) * (1.0 / W)        # (TC, H)  mean over W (lanes)
    col_mean = jnp.sum(xb, axis=1) * (1.0 / H)        # (TC, W)  mean over H (sublanes)

    if KC == 1:
        # Single C tile: plain full-width stores.
        pooled_ref[:, 0:H] = row_mean
        pooled_ref[:, H:H + W] = col_mean
    else:
        # TC is a multiple of 8 here -> sublane-aligned dynamic stores.
        off = pl.multiple_of(k * TC, 8)
        pooled_ref[pl.ds(off, TC), 0:H] = row_mean
        pooled_ref[pl.ds(off, TC), H:H + W] = col_mean

    @pl.when(k == KC - 1)
    def _finalize():
        y = pooled_ref[0:C, :]                                           # (C, S)
        y1 = jnp.dot(w1_ref[...], y,
                     preferred_element_type=jnp.float32) + b1_ref[...]    # (mip, S)
        y2 = jnp.dot(w2_ref[...], y1,
                     preferred_element_type=jnp.float32) + b2_ref[...]    # (oup, S)
        o_ref[0] = y2.astype(o_ref.dtype)


# ---------------------------------------------------------------------------
# Tiling / VMEM helpers
# ---------------------------------------------------------------------------
def _round_up(a, b):
    return (a + b - 1) // b * b


def _vmem_capacity_bytes():
    try:
        info = pltpu.get_tpu_info()
        cap = getattr(info, "vmem_capacity_bytes", None)
        if cap:
            return int(cap)
    except Exception:
        pass
    return 64 << 20  # conservative fallback (v7x per-TC VMEM)


def _choose_tc(C, H, W, itemsize, budget_bytes):
    """Largest channel-tile whose (TC, H, W) block fits the per-buffer budget."""
    per_channel = max(1, H * W * itemsize)
    fit = budget_bytes // per_channel
    if fit >= C:
        return C                 # whole channel range in one tile (KC == 1)
    return max(8, (fit // 8) * 8)  # multiple of 8 -> aligned scratch stores


# ---------------------------------------------------------------------------
# Wrapper: NCHW in / NCHW out, BN folding, BlockSpecs
# ---------------------------------------------------------------------------
def coord_pool_mlp_forward(x_nchw, params, *, tc=None):
    N, C, H, W = x_nchw.shape
    S = H + W
    mip = params["w1"].shape[0]
    oup = params["w2"].shape[0]
    itemsize = jnp.dtype(x_nchw.dtype).itemsize

    # Fold eval-mode BN1 into conv1's weight and bias (done once, in the wrapper).
    bn = params["bn1"]
    scale = bn["gamma"] * jax.lax.rsqrt(bn["var"] + EPS)                   # (mip,)
    w1f = params["w1"][:, :, 0, 0] * scale[:, None]                        # (mip, C)
    b1f = ((params["b1"] - bn["mean"]) * scale + bn["beta"]).reshape(mip, 1)
    w2m = params["w2"][:, :, 0, 0]                                         # (oup, mip)
    b2 = params["b2"].reshape(oup, 1)

    # Generation-aware VMEM sizing: big tiles on 128 MiB chips (v5e/v6e),
    # tighter tiles + limit on v7x (64 MiB / TensorCore).
    vmem_cap = _vmem_capacity_bytes()
    big_vmem = vmem_cap >= (100 << 20)
    tile_budget = (16 << 20) if big_vmem else (10 << 20)
    hard_cap = (64 << 20) if big_vmem else (40 << 20)

    if tc is None:
        tc = _choose_tc(C, H, W, itemsize, tile_budget)
    kc = pl.cdiv(C, tc)
    c_pad = kc * tc

    # Estimate the VMEM this call needs (layout-padded) and raise the scoped
    # limit to cover it, capped per-generation.
    tile_vmem = tc * _round_up(H, 8) * _round_up(W, 128) * itemsize
    scratch_vmem = c_pad * _round_up(S, 128) * 4
    weights_vmem = 4 * (_round_up(mip, 8) * (_round_up(C, 128) + 128)
                        + _round_up(oup, 8) * (_round_up(mip, 128) + 128))
    out_vmem = _round_up(oup, 8) * _round_up(S, 128) * itemsize
    est = 2 * tile_vmem + scratch_vmem + 2 * weights_vmem + 2 * out_vmem + (2 << 20)
    vmem_limit = int(min(hard_cap, max(est, 16 << 20)))

    cost = pl.CostEstimate(
        flops=int(2 * N * S * (C * mip + mip * oup)),
        transcendentals=0,
        bytes_accessed=int(N * C * H * W * itemsize + N * oup * S * itemsize
                           + (mip * C + mip + oup * mip + oup) * 4),
    )

    kernel = functools.partial(_coord_pool_mlp_kernel,
                               C=C, H=H, W=W, TC=tc, KC=kc)
    out = pl.pallas_call(
        kernel,
        out_shape=jax.ShapeDtypeStruct((N, oup, S), x_nchw.dtype),
        grid=(N, kc),
        in_specs=[
            pl.BlockSpec((1, tc, H, W), lambda n, k: (n, k, 0, 0)),
            pl.BlockSpec((mip, C), lambda n, k: (0, 0)),
            pl.BlockSpec((mip, 1), lambda n, k: (0, 0)),
            pl.BlockSpec((oup, mip), lambda n, k: (0, 0)),
            pl.BlockSpec((oup, 1), lambda n, k: (0, 0)),
        ],
        out_specs=pl.BlockSpec((1, oup, S), lambda n, k: (n, 0, 0)),
        scratch_shapes=[pltpu.VMEM((c_pad, S), jnp.float32)],
        compiler_params=pltpu.CompilerParams(
            dimension_semantics=("parallel", "arbitrary"),
            vmem_limit_bytes=vmem_limit),
        cost_estimate=cost,
    )(x_nchw, w1f, b1f, w2m, b2)

    # (N, oup, S) -> (N, oup, S, 1): free metadata reshape, matches PyTorch NCHW.
    return out[..., None]


# ---------------------------------------------------------------------------
# Pure-JAX reference (mirrors the PyTorch forward, eval-mode BN)
# ---------------------------------------------------------------------------
def _reference(x_nchw, p):
    x_h = jnp.mean(x_nchw, axis=3, keepdims=True)                 # (N,C,H,1)
    x_w = jnp.transpose(jnp.mean(x_nchw, axis=2, keepdims=True),
                        (0, 1, 3, 2))                             # (N,C,W,1)
    y = jnp.concatenate([x_h, x_w], axis=2)                       # (N,C,S,1)
    w1 = p["w1"][:, :, 0, 0]
    y = jnp.einsum("ncsk,mc->nmsk", y, w1) + p["b1"][None, :, None, None]
    bn = p["bn1"]
    sc = bn["gamma"] * jax.lax.rsqrt(bn["var"] + EPS)
    y = (y - bn["mean"][None, :, None, None]) * sc[None, :, None, None] \
        + bn["beta"][None, :, None, None]
    w2 = p["w2"][:, :, 0, 0]
    y = jnp.einsum("nmsk,om->nosk", y, w2) + p["b2"][None, :, None, None]
    return y


# ---------------------------------------------------------------------------
# Deterministic parameter construction (mirrors module __init__ shapes)
# ---------------------------------------------------------------------------
def make_params(key, inp, oup, *, reduction=32):
    mip = max(8, inp // reduction)
    ks = jax.random.split(key, 8)
    return dict(
        w1=0.1 * jax.random.normal(ks[0], (mip, inp, 1, 1), jnp.float32),
        b1=0.1 * jax.random.normal(ks[1], (mip,), jnp.float32),
        bn1=dict(
            gamma=1.0 + 0.1 * jax.random.normal(ks[2], (mip,), jnp.float32),
            beta=0.1 * jax.random.normal(ks[3], (mip,), jnp.float32),
            mean=0.1 * jax.random.normal(ks[4], (mip,), jnp.float32),
            var=jnp.abs(1.0 + 0.1 * jax.random.normal(ks[5], (mip,), jnp.float32)),
        ),
        w2=0.1 * jax.random.normal(ks[6], (oup, mip, 1, 1), jnp.float32),
        b2=0.1 * jax.random.normal(ks[7], (oup,), jnp.float32),
    )


# ---------------------------------------------------------------------------
if __name__ == "__main__":
    key = jax.random.PRNGKey(0)
    k1, k2, k3, k4 = jax.random.split(key, 4)

    # Case 1: aligned shape, default tiling (single C tile, KC == 1).
    N, inp, H, W = 2, 32, 16, 16
    oup = 32                                            # mip = max(8, 32//32) = 8
    x = jax.random.normal(k1, (N, inp, H, W), jnp.float32)
    params = make_params(k2, inp, oup, reduction=32)
    ref = _reference(x, params)

    out = jax.block_until_ready(coord_pool_mlp_forward(x, params))
    assert out.shape == (N, oup, H + W, 1), out.shape
    assert bool(jnp.all(jnp.isfinite(out)))
    assert bool(jnp.allclose(out, ref, atol=1e-4, rtol=1e-4)), \
        float(jnp.max(jnp.abs(out - ref)))

    # Case 2: forced C tiling (KC == 4) to exercise the multi-step grid path.
    out2 = jax.block_until_ready(coord_pool_mlp_forward(x, params, tc=8))
    assert bool(jnp.allclose(out2, ref, atol=1e-4, rtol=1e-4)), \
        float(jnp.max(jnp.abs(out2 - ref)))

    # Case 3: awkward sizes — C not divisible by the tile, odd H/W.
    N3, inp3, H3, W3, oup3 = 1, 20, 12, 10, 24          # mip = 8
    x3 = jax.random.normal(k3, (N3, inp3, H3, W3), jnp.float32)
    params3 = make_params(k4, inp3, oup3, reduction=32)
    ref3 = _reference(x3, params3)
    out3 = jax.block_until_ready(coord_pool_mlp_forward(x3, params3, tc=8))
    assert out3.shape == (N3, oup3, H3 + W3, 1), out3.shape
    assert bool(jnp.allclose(out3, ref3, atol=1e-4, rtol=1e-4)), \
        float(jnp.max(jnp.abs(out3 - ref3)))

    print("KERNEL_OK")
</pallas_src>

<mosaic_0001>
module attributes {stable_mosaic.version = 11 : i64} {
  func.func @_coord_pool_mlp_kernel(%arg0: i32, %arg1: i32, %arg2: memref<1x32x16x16xf32, #tpu.memory_space<vmem>>, %arg3: memref<8x32xf32, #tpu.memory_space<vmem>>, %arg4: memref<8x1xf32, #tpu.memory_space<vmem>>, %arg5: memref<32x8xf32, #tpu.memory_space<vmem>>, %arg6: memref<32x1xf32, #tpu.memory_space<vmem>>, %arg7: memref<1x32x32xf32, #tpu.memory_space<vmem>>, %arg8: memref<32x32xf32, #tpu.memory_space<vmem>>) attributes {dimension_semantics = [#tpu.dimension_semantics<parallel>, #tpu.dimension_semantics<arbitrary>], iteration_bounds = array<i64: 2, 1>, scalar_prefetch = 0 : i64, scratch_operands = 1 : i64, tpu.core_type = #tpu.core_type<tc>, window_params = [{transform_indices = @transform_0, window_bounds = array<i64: 1, 32, 16, 16>}, {pipeline_mode = #tpu.pipeline_mode<synchronous>, transform_indices = @transform_1, window_bounds = array<i64: 8, 32>}, {pipeline_mode = #tpu.pipeline_mode<synchronous>, transform_indices = @transform_2, window_bounds = array<i64: 8, 1>}, {pipeline_mode = #tpu.pipeline_mode<synchronous>, transform_indices = @transform_3, window_bounds = array<i64: 32, 8>}, {pipeline_mode = #tpu.pipeline_mode<synchronous>, transform_indices = @transform_4, window_bounds = array<i64: 32, 1>}, {transform_indices = @transform_5, window_bounds = array<i64: 1, 32, 32>}]} {
    %c0 = arith.constant 0 : index
    %c0_0 = arith.constant 0 : index
    %c0_1 = arith.constant 0 : index
    %c0_2 = arith.constant 0 : index
    %0 = vector.load %arg2[%c0, %c0_0, %c0_1, %c0_2] : memref<1x32x16x16xf32, #tpu.memory_space<vmem>>, vector<1x32x16x16xf32>
    %1 = vector.shape_cast %0 : vector<1x32x16x16xf32> to vector<32x16x16xf32>
    %cst = arith.constant dense<0.000000e+00> : vector<32x16xf32>
    %2 = vector.multi_reduction <add>, %1, %cst [2] : vector<32x16x16xf32> to vector<32x16xf32>
    %cst_3 = arith.constant 6.250000e-02 : f32
    %3 = vector.broadcast %cst_3 : f32 to vector<32x16xf32>
    %4 = arith.mulf %2, %3 : vector<32x16xf32>
    %cst_4 = arith.constant dense<0.000000e+00> : vector<32x16xf32>
    %5 = vector.multi_reduction <add>, %1, %cst_4 [1] : vector<32x16x16xf32> to vector<32x16xf32>
    %cst_5 = arith.constant 6.250000e-02 : f32
    %6 = vector.broadcast %cst_5 : f32 to vector<32x16xf32>
    %7 = arith.mulf %5, %6 : vector<32x16xf32>
    %c0_6 = arith.constant 0 : index
    %c0_7 = arith.constant 0 : index
    %8 = vector.load %arg8[%c0_6, %c0_7] : memref<32x32xf32, #tpu.memory_space<vmem>>, vector<32x16xf32>
    tpu.vector_store %arg8[%c0_6, %c0_7], %4 {strides = array<i32>} : memref<32x32xf32, #tpu.memory_space<vmem>>, vector<32x16xf32>,
    %c0_8 = arith.constant 0 : index
    %c16 = arith.constant 16 : index
    %9 = vector.load %arg8[%c0_8, %c16] : memref<32x32xf32, #tpu.memory_space<vmem>>, vector<32x16xf32>
    tpu.vector_store %arg8[%c0_8, %c16], %7 {strides = array<i32>} : memref<32x32xf32, #tpu.memory_space<vmem>>, vector<32x16xf32>,
    %c0_i32 = arith.constant 0 : i32
    %10 = arith.cmpi eq, %arg1, %c0_i32 : i32
    %11 = arith.extui %10 : i1 to i32
    %c0_i32_9 = arith.constant 0 : i32
    %12 = arith.cmpi ne, %11, %c0_i32_9 : i32
    scf.if %12 {
      %c0_10 = arith.constant 0 : index
      %c0_11 = arith.constant 0 : index
      %13 = vector.load %arg8[%c0_10, %c0_11] : memref<32x32xf32, #tpu.memory_space<vmem>>, vector<32x32xf32>
      %c0_12 = arith.constant 0 : index
      %c0_13 = arith.constant 0 : index
      %14 = vector.load %arg3[%c0_12, %c0_13] : memref<8x32xf32, #tpu.memory_space<vmem>>, vector<8x32xf32>
      %cst_14 = arith.constant dense<0.000000e+00> : vector<8x32xf32>
      %15 = tpu.matmul %14, %13, %cst_14 {dimension_numbers = #tpu.dot_dimension_numbers<[1], [0], [0], [1], [0, 0, 1, 1], [], []>} : vector<8x32xf32>, vector<32x32xf32>, vector<8x32xf32> -> vector<8x32xf32>
      %c0_15 = arith.constant 0 : index
      %c0_16 = arith.constant 0 : index
      %16 = vector.load %arg4[%c0_15, %c0_16] : memref<8x1xf32, #tpu.memory_space<vmem>>, vector<8x1xf32>
      %17 = vector.broadcast %16 : vector<8x1xf32> to vector<8x32xf32>
      %18 = arith.addf %15, %17 : vector<8x32xf32>
      %c0_17 = arith.constant 0 : index
      %c0_18 = arith.constant 0 : index
      %19 = vector.load %arg5[%c0_17, %c0_18] : memref<32x8xf32, #tpu.memory_space<vmem>>, vector<32x8xf32>
      %cst_19 = arith.constant dense<0.000000e+00> : vector<32x32xf32>
      %20 = tpu.matmul %19, %18, %cst_19 {dimension_numbers = #tpu.dot_dimension_numbers<[1], [0], [0], [1], [0, 0, 1, 1], [], []>} : vector<32x8xf32>, vector<8x32xf32>, vector<32x32xf32> -> vector<32x32xf32>
      %c0_20 = arith.constant 0 : index
      %c0_21 = arith.constant 0 : index
      %21 = vector.load %arg6[%c0_20, %c0_21] : memref<32x1xf32, #tpu.memory_space<vmem>>, vector<32x1xf32>
      %22 = vector.broadcast %21 : vector<32x1xf32> to vector<32x32xf32>
      %23 = arith.addf %20, %22 : vector<32x32xf32>
      %c0_22 = arith.constant 0 : index
      %c0_23 = arith.constant 0 : index
      %c0_24 = arith.constant 0 : index
      %24 = vector.load %arg7[%c0_22, %c0_23, %c0_24] : memref<1x32x32xf32, #tpu.memory_space<vmem>>, vector<1x32x32xf32>
      %25 = vector.shape_cast %24 : vector<1x32x32xf32> to vector<32x32xf32>
      %26 = vector.shape_cast %23 : vector<32x32xf32> to vector<1x32x32xf32>
      tpu.vector_store %arg7[%c0_22, %c0_23, %c0_24], %26 {strides = array<i32>} : memref<1x32x32xf32, #tpu.memory_space<vmem>>, vector<1x32x32xf32>,
    } else {
    }
    return
  }
  func.func @transform_0(%arg0: i32, %arg1: i32) -> (i32, i32, i32, i32) {
    %c0_i32 = arith.constant 0 : i32
    %c0_i32_0 = arith.constant 0 : i32
    %c0_i32_1 = arith.constant 0 : i32
    return %arg0, %arg1, %c0_i32, %c0_i32_0 : i32, i32, i32, i32
  }
  func.func @transform_1(%arg0: i32, %arg1: i32) -> (i32, i32) {
    %c0_i32 = arith.constant 0 : i32
    %c0_i32_0 = arith.constant 0 : i32
    %c0_i32_1 = arith.constant 0 : i32
    return %c0_i32, %c0_i32_0 : i32, i32
  }
  func.func @transform_2(%arg0: i32, %arg1: i32) -> (i32, i32) {
    %c0_i32 = arith.constant 0 : i32
    %c0_i32_0 = arith.constant 0 : i32
    %c0_i32_1 = arith.constant 0 : i32
    return %c0_i32, %c0_i32_0 : i32, i32
  }
  func.func @transform_3(%arg0: i32, %arg1: i32) -> (i32, i32) {
    %c0_i32 = arith.constant 0 : i32
    %c0_i32_0 = arith.constant 0 : i32
    %c0_i32_1 = arith.constant 0 : i32
    return %c0_i32, %c0_i32_0 : i32, i32
  }
  func.func @transform_4(%arg0: i32, %arg1: i32) -> (i32, i32) {
    %c0_i32 = arith.constant 0 : i32
    %c0_i32_0 = arith.constant 0 : i32
    %c0_i32_1 = arith.constant 0 : i32
    return %c0_i32, %c0_i32_0 : i32, i32
  }
  func.func @transform_5(%arg0: i32, %arg1: i32) -> (i32, i32, i32) {
    %c0_i32 = arith.constant 0 : i32
    %c0_i32_0 = arith.constant 0 : i32
    %c0_i32_1 = arith.constant 0 : i32
    return %arg0, %c0_i32, %c0_i32_0 : i32, i32, i32
  }
}

</mosaic_0001>

<llo_original>
// kernel: tpu_custom_call.1
$region0: #{tpu_custom_call.1}
  #allocation0 [shape = 'u32[]', space=smem, size = 0x4, offset = 0x4, fixed_abs, tag = 'smem constant byte address 0x4 - core index']
  #allocation1 [shape = 'u32[72,128]{1,0:T(1,128)}', space=vmem, size = 0x9000, scoped, tag = 'internal scratch']
  #allocation2 [shape = 'f32[32,32]{1,0:T(8,128)}', space=vmem, size = 0x4000, scoped, tag = 'scratch operand']
  %s0 = inlined_call_operand.vmem [shape: f32[2,32,16,16], index: 0, kind: input, shape index: {}]
  %s1 = inlined_call_operand.vmem [shape: f32[8,32], index: 1, kind: input, shape index: {}]
  %s2 = inlined_call_operand.vmem [shape: f32[8,1], index: 2, kind: input, shape index: {}]
  %s3 = inlined_call_operand.vmem [shape: f32[32,8], index: 3, kind: input, shape index: {}]
  %s4 = inlined_call_operand.vmem [shape: f32[32,1], index: 4, kind: input, shape index: {}]
  %s5 = inlined_call_operand.hbm [shape: f32[2,32,32], index: 5, kind: output, shape index: {}]
  %s6 = sld [smem:[#allocation0]]
  $region57: #{tpu_custom_call.1} parent=0
    _
  %s8 = ssub.s32 1, %s6
  %s9 = scalar_select 0, %s8, %s6
  $region1: #{tpu_custom_call.1} parent=0
    #allocation3 [shape = 'u8[32768]{0}', space=vmem, size = 0x8000, scoped, tag = 'output window, operand 0']
    #allocation4 [shape = 's32[2]{0}', space=sflag, size = 0x8, scoped, tag = 'scoped memory for tpu_custom_call.1']
    %10 = vsyncpa [#allocation4], 0
    %s11 = scalar_lea.sflag [#allocation4], 1
    %12 = vsyncpa %s11, 0
    loop: start=0, step=1, limit=4
    $region2: #{tpu_custom_call.1} parent=1 // loop_pre_header
      _
    $region3: #{tpu_custom_call.1} parent=1 // loop_header
      %s14 = sphi 0, %s18
      %p15 = scmp.ge.s32.totalorder %s14, 4
      %s21 = sphi 0, %s33
      %s22 = sphi 0, %s29
      %s23 = sphi 0, %s21
      %s24 = sphi 0, %s22
      %s25 = sphi 0, %s23
      %s26 = sphi 0, %s24
      %s38 = sphi 0, %s40
      %s41 = sphi 0, %s38
      %s42 = sphi 0, %s41
      %s58 = sphi 0, %s42
      %s62 = sphi 0, %s62
      %s64 = sphi 0, %s62
      %s65 = sphi 0, %s64
      %s79 = sphi 0, %s65
      %s83 = sphi 0, %s83
      %s85 = sphi 0, %s83
      %s86 = sphi 0, %s85
      %s100 = sphi 0, %s86
      %s104 = sphi 0, %s104
      %s106 = sphi 0, %s104
      %s107 = sphi 0, %s106
      %s121 = sphi 0, %s107
      %s125 = sphi 0, %s125
      %s127 = sphi 0, %s125
      %s128 = sphi 0, %s127
      %s142 = sphi 0, %s128
      %s148 = sphi 0, %s150
      %s151 = sphi 0, %s148
      %s152 = sphi 0, %s151
      %s168 = sphi 0, %s152
    $region4: #{tpu_custom_call.1} parent=1 // loop_header_branch
      %17 = sbr.rel (%p15) target = $region8
    $region5: #{tpu_custom_call.1} parent=1 // loop_body
      %s19 = ssub.s32 %s14, 1
      %s20 = ssub.s32 %s14, 2
      %s27 = sadd.s32 1, %s22
      %p28 = scmp.ge.s32.totalorder %s27, 1
      %s29 = scalar_select %p28, 0, %s27
      %s30 = sadd.s32 1, %s21
      %s31 = scalar_select %p28, %s30, %s21
      %p32 = scmp.ge.s32.totalorder %s31, 2
      %s33 = scalar_select %p32, 0, %s31
      %s34 = ssub.s32 %s21, %s33
      %s35 = ssub.s32 %s22, %s29
      %s36 = sor.u32 %s34, %s35
      %p37 = scmp.eq.s32.totalorder %s36, 0
      %s39 = sadd.s32 %s38, 1
      %s40 = scalar_select %p37, %s38, %s39
      %p43 = pneg %p37
      %p44 = scmp.eq.s32.totalorder %s14, 1
      %p45 = por %p43, %p44
      %p46 = scmp.ne.s32.totalorder %s38, %s41
      %p47 = scmp.eq.s32.totalorder %s14, 0
      %p48 = por %p46, %p47
      %p49 = scmp.ne.s32.totalorder %s38, %s41
      %p50 = scmp.eq.s32.totalorder %s19, 1
      %p51 = por %p49, %p50
      %p52 = scmp.ne.s32.totalorder %s41, %s42
      %p53 = scmp.eq.s32.totalorder %s19, 0
      %p54 = por %p52, %p53
      %p55 = scmp.ne.s32.totalorder %s41, %s42
      %p56 = scmp.eq.s32.totalorder %s20, 1
      %p57 = por %p55, %p56
      %p59 = scmp.ne.s32.totalorder %s42, %s58
      %p60 = scmp.eq.s32.totalorder %s20, 0
      %p61 = por %p59, %p60
      %s63 = sadd.s32 %s62, 1
      %p66 = scmp.eq.s32.totalorder %s14, 1
      %p67 = scmp.ne.s32.totalorder %s62, %s64
      %p68 = scmp.eq.s32.totalorder %s14, 0
      %p69 = por %p67, %p68
      %p70 = scmp.ne.s32.totalorder %s62, %s64
      %p71 = scmp.eq.s32.totalorder %s19, 1
      %p72 = por %p70, %p71
      %p73 = scmp.ne.s32.totalorder %s64, %s65
      %p74 = scmp.eq.s32.totalorder %s19, 0
      %p75 = por %p73, %p74
      %p76 = scmp.ne.s32.totalorder %s64, %s65
      %p77 = scmp.eq.s32.totalorder %s20, 1
      %p78 = por %p76, %p77
      %p80 = scmp.ne.s32.totalorder %s65, %s79
      %p81 = scmp.eq.s32.totalorder %s20, 0
      %p82 = por %p80, %p81
      %s84 = sadd.s32 %s83, 1
      %p87 = scmp.eq.s32.totalorder %s14, 1
      %p88 = scmp.ne.s32.totalorder %s83, %s85
      %p89 = scmp.eq.s32.totalorder %s14, 0
      %p90 = por %p88, %p89
      %p91 = scmp.ne.s32.totalorder %s83, %s85
      %p92 = scmp.eq.s32.totalorder %s19, 1
      %p93 = por %p91, %p92
      %p94 = scmp.ne.s32.totalorder %s85, %s86
      %p95 = scmp.eq.s32.totalorder %s19, 0
      %p96 = por %p94, %p95
      %p97 = scmp.ne.s32.totalorder %s85, %s86
      %p98 = scmp.eq.s32.totalorder %s20, 1
      %p99 = por %p97, %p98
      %p101 = scmp.ne.s32.totalorder %s86, %s100
      %p102 = scmp.eq.s32.totalorder %s20, 0
      %p103 = por %p101, %p102
      %s105 = sadd.s32 %s104, 1
      %p108 = scmp.eq.s32.totalorder %s14, 1
      %p109 = scmp.ne.s32.totalorder %s104, %s106
      %p110 = scmp.eq.s32.totalorder %s14, 0
      %p111 = por %p109, %p110
      %p112 = scmp.ne.s32.totalorder %s104, %s106
      %p113 = scmp.eq.s32.totalorder %s19, 1
      %p114 = por %p112, %p113
      %p115 = scmp.ne.s32.totalorder %s106, %s107
      %p116 = scmp.eq.s32.totalorder %s19, 0
      %p117 = por %p115, %p116
      %p118 = scmp.ne.s32.totalorder %s106, %s107
      %p119 = scmp.eq.s32.totalorder %s20, 1
      %p120 = por %p118, %p119
      %p122 = scmp.ne.s32.totalorder %s107, %s121
      %p123 = scmp.eq.s32.totalorder %s20, 0
      %p124 = por %p122, %p123
      %s126 = sadd.s32 %s125, 1
      %p129 = scmp.eq.s32.totalorder %s14, 1
      %p130 = scmp.ne.s32.totalorder %s125, %s127
      %p131 = scmp.eq.s32.totalorder %s14, 0
      %p132 = por %p130, %p131
      %p133 = scmp.ne.s32.totalorder %s125, %s127
      %p134 = scmp.eq.s32.totalorder %s19, 1
      %p135 = por %p133, %p134
      %p136 = scmp.ne.s32.totalorder %s127, %s128
      %p137 = scmp.eq.s32.totalorder %s19, 0
      %p138 = por %p136, %p137
      %p139 = scmp.ne.s32.totalorder %s127, %s128
      %p140 = scmp.eq.s32.totalorder %s20, 1
      %p141 = por %p139, %p140
      %p143 = scmp.ne.s32.totalorder %s128, %s142
      %p144 = scmp.eq.s32.totalorder %s20, 0
      %p145 = por %p143, %p144
      %s146 = ssub.s32 %s21, %s33
      %p147 = scmp.eq.s32.totalorder %s146, 0
      %s149 = sadd.s32 %s148, 1
      %s150 = scalar_select %p147, %s148, %s149
      %p153 = pneg %p147
      %p154 = scmp.eq.s32.totalorder %s14, 1
      %p155 = por %p153, %p154
      %p156 = scmp.ne.s32.totalorder %s148, %s151
      %p157 = scmp.eq.s32.totalorder %s14, 0
      %p158 = por %p156, %p157
      %p159 = scmp.ne.s32.totalorder %s148, %s151
      %p160 = scmp.eq.s32.totalorder %s19, 1
      %p161 = por %p159, %p160
      %p162 = scmp.ne.s32.totalorder %s151, %s152
      %p163 = scmp.eq.s32.totalorder %s19, 0
      %p164 = por %p162, %p163
      %p165 = scmp.ne.s32.totalorder %s151, %s152
      %p166 = scmp.eq.s32.totalorder %s20, 1
      %p167 = por %p165, %p166
      %p169 = scmp.ne.s32.totalorder %s152, %s168
      %p170 = scmp.eq.s32.totalorder %s20, 0
      %p171 = por %p169, %p170
      %p172 = scmp.le.s32.totalorder 1, %s14
      %p173 = scmp.lt.s32.totalorder %s14, 3
      %p174 = pnand %p172, %p173
      %p175 = pneg %p174
      // Predicated region
      $region9: #{tpu_custom_call.1} parent=5 // pred_check
        _
      $region10: #{tpu_custom_call.1} parent=5 // pred_check_branch
        %177 = sbr.rel (%p174) target = $region12
      $region11: #{tpu_custom_call.1} parent=5 // pred_region
        %s178 = ssub.s32 %s14, 1
        // Predicated region
        $region13: #{tpu_custom_call.1} parent=11 // pred_check
          %p179 = pneg %p75
        $region14: #{tpu_custom_call.1} parent=11 // pred_check_branch
          %181 = sbr.rel (%p179) target = $region16
        $region15: #{tpu_custom_call.1} parent=11 // pred_region
          _
        $region16: #{tpu_custom_call.1} parent=11 // pred_fallthru
          _
        // Predicated region
        $region17: #{tpu_custom_call.1} parent=11 // pred_check
          %p182 = pneg %p96
        $region18: #{tpu_custom_call.1} parent=11 // pred_check_branch
          %184 = sbr.rel (%p182) target = $region20
        $region19: #{tpu_custom_call.1} parent=11 // pred_region
          _
        $region20: #{tpu_custom_call.1} parent=11 // pred_fallthru
          _
        // Predicated region
        $region21: #{tpu_custom_call.1} parent=11 // pred_check
          %p185 = pneg %p117
        $region22: #{tpu_custom_call.1} parent=11 // pred_check_branch
          %187 = sbr.rel (%p185) target = $region24
        $region23: #{tpu_custom_call.1} parent=11 // pred_region
          _
        $region24: #{tpu_custom_call.1} parent=11 // pred_fallthru
          _
        // Predicated region
        $region25: #{tpu_custom_call.1} parent=11 // pred_check
          %p188 = pneg %p138
        $region26: #{tpu_custom_call.1} parent=11 // pred_check_branch
          %190 = sbr.rel (%p188) target = $region28
        $region27: #{tpu_custom_call.1} parent=11 // pred_region
          _
        $region28: #{tpu_custom_call.1} parent=11 // pred_fallthru
          _
      $region12: #{tpu_custom_call.1} parent=5 // pred_fallthru
        _
      %p191 = scmp.lt.s32.totalorder %s14, 2
      // Predicated region
      $region29: #{tpu_custom_call.1} parent=5 // pred_check
        %p192 = pneg %p191
      $region30: #{tpu_custom_call.1} parent=5 // pred_check_branch
        %194 = sbr.rel (%p192) target = $region32
      $region31: #{tpu_custom_call.1} parent=5 // pred_region
        // Predicated region
        $region33: #{tpu_custom_call.1} parent=31 // pred_check
          %p195 = pneg %p48
        $region34: #{tpu_custom_call.1} parent=31 // pred_check_branch
          %197 = sbr.rel (%p195) target = $region36
        $region35: #{tpu_custom_call.1} parent=31 // pred_region
          %s198 = smul.u32 32, %s22
          %p199 = scmp.lt.s32.totalorder %s21, 1
          %s200 = scalar_select %p199, %s21, 1
          %p201 = scmp.lt.s32.totalorder %s198, 31
          %s202 = scalar_select %p201, %s198, 31
          %s203 = smul.addr %s202, 2
          %s204 = smul.addr %s200, 64
          %s205 = sadd.s32 %s203, %s204
          %s206 = smul.addr %s205, 8
          %s207 = scalar_lea.vmem %s0, %s206
          %s208 = smul.u32 32, %s22
        $region36: #{tpu_custom_call.1} parent=31 // pred_fallthru
          _
      $region32: #{tpu_custom_call.1} parent=5 // pred_fallthru
        _
      %p209 = scmp.le.s32.totalorder 1, %s14
      %p210 = scmp.lt.s32.totalorder %s14, 3
      %p211 = pnand %p209, %p210
      %p212 = pneg %p211
      // Predicated region
      $region37: #{tpu_custom_call.1} parent=5 // pred_check
        _
      $region38: #{tpu_custom_call.1} parent=5 // pred_check_branch
        %214 = sbr.rel (%p211) target = $region40
      $region39: #{tpu_custom_call.1} parent=5 // pred_region
        %s215 = ssub.s32 %s14, 1
        %s216 = smul.u32 32, %s24
        %p217 = scmp.lt.s32.totalorder %s23, 1
        %s218 = scalar_select %p217, %s23, 1
        %p219 = scmp.lt.s32.totalorder %s216, 31
        %s220 = scalar_select %p219, %s216, 31
        %s221 = smul.addr %s220, 2
        %s222 = smul.addr %s218, 64
        %s223 = sadd.s32 %s221, %s222
        %s224 = smul.addr %s223, 8
        %s225 = scalar_lea.vmem %s0, %s224
        %p226 = pneg %p54
        %p227 = pneg %p51
        %p228 = pneg %p75
        %p229 = pneg %p72
        %p230 = pneg %p96
        %p231 = pneg %p93
        %p232 = pneg %p117
        %p233 = pneg %p114
        %p234 = pneg %p138
        %p235 = pneg %p135
        %p236 = pneg %p164
        %p237 = pneg %p161
        %s238 = sand.u32 %s151, 1
        %s239 = scalar_lea.sflag [#allocation4], %s238
        %s240 = sand.u32 %s151, 1
        %s241 = smul.addr %s240, 32
        %s242 = scalar_lea.vmem [#allocation3], %s241
        %s243 = smul.u32 32, %s24
        %p244 = scmp.lt.s32.totalorder %s23, 1
        %s245 = scalar_select %p244, %s23, 1
        %p246 = scmp.lt.s32.totalorder %s243, 31
        %s247 = scalar_select %p246, %s243, 31
        %s248 = smul.addr %s247, 2
        %s249 = smul.addr %s245, 64
        %s250 = sadd.s32 %s248, %s249
        %s251 = smul.addr %s250, 8
        %s252 = scalar_lea.vmem %s0, %s251
        %s253 = smul.u32 32, %s24
        %v254 = vld [vmem:[%s252] sm:$0xff]
        %v255 = vld [vmem:[%s252 + $0x8] sm:$0xff]
        %v256 = vld [vmem:[%s252 + $0x10] sm:$0xff]
        %v257 = vld [vmem:[%s252 + $0x18] sm:$0xff]
        %v258 = vld [vmem:[%s252 + $0x20] sm:$0xff]
        %v259 = vld [vmem:[%s252 + $0x28] sm:$0xff]
        %v260 = vld [vmem:[%s252 + $0x30] sm:$0xff]
        %v261 = vld [vmem:[%s252 + $0x38] sm:$0xff]
        %v262 = vld [vmem:[%s252 + $0x40] sm:$0xff]
        %v263 = vld [vmem:[%s252 + $0x48] sm:$0xff]
        %v264 = vld [vmem:[%s252 + $0x50] sm:$0xff]
        %v265 = vld [vmem:[%s252 + $0x58] sm:$0xff]
        %v266 = vld [vmem:[%s252 + $0x60] sm:$0xff]
        %v267 = vld [vmem:[%s252 + $0x68] sm:$0xff]
        %v268 = vld [vmem:[%s252 + $0x70] sm:$0xff]
        %v269 = vld [vmem:[%s252 + $0x78] sm:$0xff]
        %v270 = vld [vmem:[%s252 + $0x80] sm:$0xff]
        %v271 = vld [vmem:[%s252 + $0x88] sm:$0xff]
        %v272 = vld [vmem:[%s252 + $0x90] sm:$0xff]
        %v273 = vld [vmem:[%s252 + $0x98] sm:$0xff]
        %v274 = vld [vmem:[%s252 + $0xa0] sm:$0xff]
        %v275 = vld [vmem:[%s252 + $0xa8] sm:$0xff]
        %v276 = vld [vmem:[%s252 + $0xb0] sm:$0xff]
        %v277 = vld [vmem:[%s252 + $0xb8] sm:$0xff]
        %v278 = vld [vmem:[%s252 + $0xc0] sm:$0xff]
        %v279 = vld [vmem:[%s252 + $0xc8] sm:$0xff]
        %v280 = vld [vmem:[%s252 + $0xd0] sm:$0xff]
        %v281 = vld [vmem:[%s252 + $0xd8] sm:$0xff]
        %v282 = vld [vmem:[%s252 + $0xe0] sm:$0xff]
        %v283 = vld [vmem:[%s252 + $0xe8] sm:$0xff]
        %v284 = vld [vmem:[%s252 + $0xf0] sm:$0xff]
        %v285 = vld [vmem:[%s252 + $0xf8] sm:$0xff]
        %v286 = vld [vmem:[%s252 + $0x100] sm:$0xff]
        %v287 = vld [vmem:[%s252 + $0x108] sm:$0xff]
        %v288 = vld [vmem:[%s252 + $0x110] sm:$0xff]
        %v289 = vld [vmem:[%s252 + $0x118] sm:$0xff]
        %v290 = vld [vmem:[%s252 + $0x120] sm:$0xff]
        %v291 = vld [vmem:[%s252 + $0x128] sm:$0xff]
        %v292 = vld [vmem:[%s252 + $0x130] sm:$0xff]
        %v293 = vld [vmem:[%s252 + $0x138] sm:$0xff]
        %v294 = vld [vmem:[%s252 + $0x140] sm:$0xff]
        %v295 = vld [vmem:[%s252 + $0x148] sm:$0xff]
        %v296 = vld [vmem:[%s252 + $0x150] sm:$0xff]
        %v297 = vld [vmem:[%s252 + $0x158] sm:$0xff]
        %v298 = vld [vmem:[%s252 + $0x160] sm:$0xff]
        %v299 = vld [vmem:[%s252 + $0x168] sm:$0xff]
        %v300 = vld [vmem:[%s252 + $0x170] sm:$0xff]
        %v301 = vld [vmem:[%s252 + $0x178] sm:$0xff]
        %v302 = vld [vmem:[%s252 + $0x180] sm:$0xff]
        %v303 = vld [vmem:[%s252 + $0x188] sm:$0xff]
        %v304 = vld [vmem:[%s252 + $0x190] sm:$0xff]
        %v305 = vld [vmem:[%s252 + $0x198] sm:$0xff]
        %v306 = vld [vmem:[%s252 + $0x1a0] sm:$0xff]
        %v307 = vld [vmem:[%s252 + $0x1a8] sm:$0xff]
        %v308 = vld [vmem:[%s252 + $0x1b0] sm:$0xff]
        %v309 = vld [vmem:[%s252 + $0x1b8] sm:$0xff]
        %v310 = vld [vmem:[%s252 + $0x1c0] sm:$0xff]
        %v311 = vld [vmem:[%s252 + $0x1c8] sm:$0xff]
        %v312 = vld [vmem:[%s252 + $0x1d0] sm:$0xff]
        %v313 = vld [vmem:[%s252 + $0x1d8] sm:$0xff]
        %v314 = vld [vmem:[%s252 + $0x1e0] sm:$0xff]
        %v315 = vld [vmem:[%s252 + $0x1e8] sm:$0xff]
        %v316 = vld [vmem:[%s252 + $0x1f0] sm:$0xff]
        %v317 = vld [vmem:[%s252 + $0x1f8] sm:$0xff]
        %vm318 = vcmask 130048
        %v319 = vsel %vm318, %v254, 0.0
        %320 = vadd.xlane.f32.xlu0 %v319
        %v321 = vpop.xlane.xlu0 %320
        %v322 = vsel %vm318, %v255, 0.0
        %323 = vadd.xlane.f32.xlu0 %v322
        %v324 = vpop.xlane.xlu0 %323
        %v325 = vsel %vm318, %v256, 0.0
        %326 = vadd.xlane.f32.xlu0 %v325
        %v327 = vpop.xlane.xlu0 %326
        %v328 = vsel %vm318, %v257, 0.0
        %329 = vadd.xlane.f32.xlu0 %v328
        %v330 = vpop.xlane.xlu0 %329
        %v331 = vsel %vm318, %v258, 0.0
        %332 = vadd.xlane.f32.xlu0 %v331
        %v333 = vpop.xlane.xlu0 %332
        %v334 = vsel %vm318, %v259, 0.0
        %335 = vadd.xlane.f32.xlu0 %v334
        %v336 = vpop.xlane.xlu0 %335
        %v337 = vsel %vm318, %v260, 0.0
        %338 = vadd.xlane.f32.xlu0 %v337
        %v339 = vpop.xlane.xlu0 %338
        %v340 = vsel %vm318, %v261, 0.0
        %341 = vadd.xlane.f32.xlu0 %v340
        %v342 = vpop.xlane.xlu0 %341
        %v343 = vsel %vm318, %v262, 0.0
        %344 = vadd.xlane.f32.xlu0 %v343
        %v345 = vpop.xlane.xlu0 %344
        %v346 = vsel %vm318, %v263, 0.0
        %347 = vadd.xlane.f32.xlu0 %v346
        %v348 = vpop.xlane.xlu0 %347
        %v349 = vsel %vm318, %v264, 0.0
        %350 = vadd.xlane.f32.xlu0 %v349
        %v351 = vpop.xlane.xlu0 %350
        %v352 = vsel %vm318, %v265, 0.0
        %353 = vadd.xlane.f32.xlu0 %v352
        %v354 = vpop.xlane.xlu0 %353
        %v355 = vsel %vm318, %v266, 0.0
        %356 = vadd.xlane.f32.xlu0 %v355
        %v357 = vpop.xlane.xlu0 %356
        %v358 = vsel %vm318, %v267, 0.0
        %359 = vadd.xlane.f32.xlu0 %v358
        %v360 = vpop.xlane.xlu0 %359
        %v361 = vsel %vm318, %v268, 0.0
        %362 = vadd.xlane.f32.xlu0 %v361
        %v363 = vpop.xlane.xlu0 %362
        %v364 = vsel %vm318, %v269, 0.0
        %365 = vadd.xlane.f32.xlu0 %v364
        %v366 = vpop.xlane.xlu0 %365
        %v367 = vsel %vm318, %v270, 0.0
        %368 = vadd.xlane.f32.xlu0 %v367
        %v369 = vpop.xlane.xlu0 %368
        %v370 = vsel %vm318, %v271, 0.0
        %371 = vadd.xlane.f32.xlu0 %v370
        %v372 = vpop.xlane.xlu0 %371
        %v373 = vsel %vm318, %v272, 0.0
        %374 = vadd.xlane.f32.xlu0 %v373
        %v375 = vpop.xlane.xlu0 %374
        %v376 = vsel %vm318, %v273, 0.0
        %377 = vadd.xlane.f32.xlu0 %v376
        %v378 = vpop.xlane.xlu0 %377
        %v379 = vsel %vm318, %v274, 0.0
        %380 = vadd.xlane.f32.xlu0 %v379
        %v381 = vpop.xlane.xlu0 %380
        %v382 = vsel %vm318, %v275, 0.0
        %383 = vadd.xlane.f32.xlu0 %v382
        %v384 = vpop.xlane.xlu0 %383
        %v385 = vsel %vm318, %v276, 0.0
        %386 = vadd.xlane.f32.xlu0 %v385
        %v387 = vpop.xlane.xlu0 %386
        %v388 = vsel %vm318, %v277, 0.0
        %389 = vadd.xlane.f32.xlu0 %v388
        %v390 = vpop.xlane.xlu0 %389
        %v391 = vsel %vm318, %v278, 0.0
        %392 = vadd.xlane.f32.xlu0 %v391
        %v393 = vpop.xlane.xlu0 %392
        %v394 = vsel %vm318, %v279, 0.0
        %395 = vadd.xlane.f32.xlu0 %v394
        %v396 = vpop.xlane.xlu0 %395
        %v397 = vsel %vm318, %v280, 0.0
        %398 = vadd.xlane.f32.xlu0 %v397
        %v399 = vpop.xlane.xlu0 %398
        %v400 = vsel %vm318, %v281, 0.0
        %401 = vadd.xlane.f32.xlu0 %v400
        %v402 = vpop.xlane.xlu0 %401
        %v403 = vsel %vm318, %v282, 0.0
        %404 = vadd.xlane.f32.xlu0 %v403
        %v405 = vpop.xlane.xlu0 %404
        %v406 = vsel %vm318, %v283, 0.0
        %407 = vadd.xlane.f32.xlu0 %v406
        %v408 = vpop.xlane.xlu0 %407
        %v409 = vsel %vm318, %v284, 0.0
        %410 = vadd.xlane.f32.xlu0 %v409
        %v411 = vpop.xlane.xlu0 %410
        %v412 = vsel %vm318, %v285, 0.0
        %413 = vadd.xlane.f32.xlu0 %v412
        %v414 = vpop.xlane.xlu0 %413
        %v415 = vsel %vm318, %v286, 0.0
        %416 = vadd.xlane.f32.xlu0 %v415
        %v417 = vpop.xlane.xlu0 %416
        %v418 = vsel %vm318, %v287, 0.0
        %419 = vadd.xlane.f32.xlu0 %v418
        %v420 = vpop.xlane.xlu0 %419
        %v421 = vsel %vm318, %v288, 0.0
        %422 = vadd.xlane.f32.xlu0 %v421
        %v423 = vpop.xlane.xlu0 %422
        %v424 = vsel %vm318, %v289, 0.0
        %425 = vadd.xlane.f32.xlu0 %v424
        %v426 = vpop.xlane.xlu0 %425
        %v427 = vsel %vm318, %v290, 0.0
        %428 = vadd.xlane.f32.xlu0 %v427
        %v429 = vpop.xlane.xlu0 %428
        %v430 = vsel %vm318, %v291, 0.0
        %431 = vadd.xlane.f32.xlu0 %v430
        %v432 = vpop.xlane.xlu0 %431
        %v433 = vsel %vm318, %v292, 0.0
        %434 = vadd.xlane.f32.xlu0 %v433
        %v435 = vpop.xlane.xlu0 %434
        %v436 = vsel %vm318, %v293, 0.0
        %437 = vadd.xlane.f32.xlu0 %v436
        %v438 = vpop.xlane.xlu0 %437
        %v439 = vsel %vm318, %v294, 0.0
        %440 = vadd.xlane.f32.xlu0 %v439
        %v441 = vpop.xlane.xlu0 %440
        %v442 = vsel %vm318, %v295, 0.0
        %443 = vadd.xlane.f32.xlu0 %v442
        %v444 = vpop.xlane.xlu0 %443
        %v445 = vsel %vm318, %v296, 0.0
        %446 = vadd.xlane.f32.xlu0 %v445
        %v447 = vpop.xlane.xlu0 %446
        %v448 = vsel %vm318, %v297, 0.0
        %449 = vadd.xlane.f32.xlu0 %v448
        %v450 = vpop.xlane.xlu0 %449
        %v451 = vsel %vm318, %v298, 0.0
        %452 = vadd.xlane.f32.xlu0 %v451
        %v453 = vpop.xlane.xlu0 %452
        %v454 = vsel %vm318, %v299, 0.0
        %455 = vadd.xlane.f32.xlu0 %v454
        %v456 = vpop.xlane.xlu0 %455
        %v457 = vsel %vm318, %v300, 0.0
        %458 = vadd.xlane.f32.xlu0 %v457
        %v459 = vpop.xlane.xlu0 %458
        %v460 = vsel %vm318, %v301, 0.0
        %461 = vadd.xlane.f32.xlu0 %v460
        %v462 = vpop.xlane.xlu0 %461
        %v463 = vsel %vm318, %v302, 0.0
        %464 = vadd.xlane.f32.xlu0 %v463
        %v465 = vpop.xlane.xlu0 %464
        %v466 = vsel %vm318, %v303, 0.0
        %467 = vadd.xlane.f32.xlu0 %v466
        %v468 = vpop.xlane.xlu0 %467
        %v469 = vsel %vm318, %v304, 0.0
        %470 = vadd.xlane.f32.xlu0 %v469
        %v471 = vpop.xlane.xlu0 %470
        %v472 = vsel %vm318, %v305, 0.0
        %473 = vadd.xlane.f32.xlu0 %v472
        %v474 = vpop.xlane.xlu0 %473
        %v475 = vsel %vm318, %v306, 0.0
        %476 = vadd.xlane.f32.xlu0 %v475
        %v477 = vpop.xlane.xlu0 %476
        %v478 = vsel %vm318, %v307, 0.0
        %479 = vadd.xlane.f32.xlu0 %v478
        %v480 = vpop.xlane.xlu0 %479
        %v481 = vsel %vm318, %v308, 0.0
        %482 = vadd.xlane.f32.xlu0 %v481
        %v483 = vpop.xlane.xlu0 %482
        %v484 = vsel %vm318, %v309, 0.0
        %485 = vadd.xlane.f32.xlu0 %v484
        %v486 = vpop.xlane.xlu0 %485
        %v487 = vsel %vm318, %v310, 0.0
        %488 = vadd.xlane.f32.xlu0 %v487
        %v489 = vpop.xlane.xlu0 %488
        %v490 = vsel %vm318, %v311, 0.0
        %491 = vadd.xlane.f32.xlu0 %v490
        %v492 = vpop.xlane.xlu0 %491
        %v493 = vsel %vm318, %v312, 0.0
        %494 = vadd.xlane.f32.xlu0 %v493
        %v495 = vpop.xlane.xlu0 %494
        %v496 = vsel %vm318, %v313, 0.0
        %497 = vadd.xlane.f32.xlu0 %v496
        %v498 = vpop.xlane.xlu0 %497
        %v499 = vsel %vm318, %v314, 0.0
        %500 = vadd.xlane.f32.xlu0 %v499
        %v501 = vpop.xlane.xlu0 %500
        %v502 = vsel %vm318, %v315, 0.0
        %503 = vadd.xlane.f32.xlu0 %v502
        %v504 = vpop.xlane.xlu0 %503
        %v505 = vsel %vm318, %v316, 0.0
        %506 = vadd.xlane.f32.xlu0 %v505
        %v507 = vpop.xlane.xlu0 %506
        %v508 = vsel %vm318, %v317, 0.0
        %509 = vadd.xlane.f32.xlu0 %v508
        %v510 = vpop.xlane.xlu0 %509
        %v511 = vmul.f32 %v321, 0.0625
        %v512 = vmul.f32 %v324, 0.0625
        %v513 = vmul.f32 %v327, 0.0625
        %v514 = vmul.f32 %v330, 0.0625
        %v515 = vmul.f32 %v333, 0.0625
        %v516 = vmul.f32 %v336, 0.0625
        %v517 = vmul.f32 %v339, 0.0625
        %v518 = vmul.f32 %v342, 0.0625
        %v519 = vmul.f32 %v345, 0.0625
        %v520 = vmul.f32 %v348, 0.0625
        %v521 = vmul.f32 %v351, 0.0625
        %v522 = vmul.f32 %v354, 0.0625
        %v523 = vmul.f32 %v357, 0.0625
        %v524 = vmul.f32 %v360, 0.0625
        %v525 = vmul.f32 %v363, 0.0625
        %v526 = vmul.f32 %v366, 0.0625
        %v527 = vmul.f32 %v369, 0.0625
        %v528 = vmul.f32 %v372, 0.0625
        %v529 = vmul.f32 %v375, 0.0625
        %v530 = vmul.f32 %v378, 0.0625
        %v531 = vmul.f32 %v381, 0.0625
        %v532 = vmul.f32 %v384, 0.0625
        %v533 = vmul.f32 %v387, 0.0625
        %v534 = vmul.f32 %v390, 0.0625
        %v535 = vmul.f32 %v393, 0.0625
        %v536 = vmul.f32 %v396, 0.0625
        %v537 = vmul.f32 %v399, 0.0625
        %v538 = vmul.f32 %v402, 0.0625
        %v539 = vmul.f32 %v405, 0.0625
        %v540 = vmul.f32 %v408, 0.0625
        %v541 = vmul.f32 %v411, 0.0625
        %v542 = vmul.f32 %v414, 0.0625
        %v543 = vmul.f32 %v417, 0.0625
        %v544 = vmul.f32 %v420, 0.0625
        %v545 = vmul.f32 %v423, 0.0625
        %v546 = vmul.f32 %v426, 0.0625
        %v547 = vmul.f32 %v429, 0.0625
        %v548 = vmul.f32 %v432, 0.0625
        %v549 = vmul.f32 %v435, 0.0625
        %v550 = vmul.f32 %v438, 0.0625
        %v551 = vmul.f32 %v441, 0.0625
        %v552 = vmul.f32 %v444, 0.0625
        %v553 = vmul.f32 %v447, 0.0625
        %v554 = vmul.f32 %v450, 0.0625
        %v555 = vmul.f32 %v453, 0.0625
        %v556 = vmul.f32 %v456, 0.0625
        %v557 = vmul.f32 %v459, 0.0625
        %v558 = vmul.f32 %v462, 0.0625
        %v559 = vmul.f32 %v465, 0.0625
        %v560 = vmul.f32 %v468, 0.0625
        %v561 = vmul.f32 %v471, 0.0625
        %v562 = vmul.f32 %v474, 0.0625
        %v563 = vmul.f32 %v477, 0.0625
        %v564 = vmul.f32 %v480, 0.0625
        %v565 = vmul.f32 %v483, 0.0625
        %v566 = vmul.f32 %v486, 0.0625
        %v567 = vmul.f32 %v489, 0.0625
        %v568 = vmul.f32 %v492, 0.0625
        %v569 = vmul.f32 %v495, 0.0625
        %v570 = vmul.f32 %v498, 0.0625
        %v571 = vmul.f32 %v501, 0.0625
        %v572 = vmul.f32 %v504, 0.0625
        %v573 = vmul.f32 %v507, 0.0625
        %v574 = vmul.f32 %v510, 0.0625
        %v575 = vadd.f32 %v319, %v322
        %v576 = vrot.slane %v575, 4
        %v577 = vadd.f32 %v575, %v576
        %v578 = vrot.slane %v577, 2
        %v579 = vadd.f32 %v577, %v578
        %v580 = vrot.slane %v579, 1
        %v581 = vadd.f32 %v579, %v580
        %v582 = vadd.f32 %v325, %v328
        %v583 = vrot.slane %v582, 4
        %v584 = vadd.f32 %v582, %v583
        %v585 = vrot.slane %v584, 2
        %v586 = vadd.f32 %v584, %v585
        %v587 = vrot.slane %v586, 1
        %v588 = vadd.f32 %v586, %v587
        %v589 = vadd.f32 %v331, %v334
        %v590 = vrot.slane %v589, 4
        %v591 = vadd.f32 %v589, %v590
        %v592 = vrot.slane %v591, 2
        %v593 = vadd.f32 %v591, %v592
        %v594 = vrot.slane %v593, 1
        %v595 = vadd.f32 %v593, %v594
        %v596 = vadd.f32 %v337, %v340
        %v597 = vrot.slane %v596, 4
        %v598 = vadd.f32 %v596, %v597
        %v599 = vrot.slane %v598, 2
        %v600 = vadd.f32 %v598, %v599
        %v601 = vrot.slane %v600, 1
        %v602 = vadd.f32 %v600, %v601
        %v603 = vadd.f32 %v343, %v346
        %v604 = vrot.slane %v603, 4
        %v605 = vadd.f32 %v603, %v604
        %v606 = vrot.slane %v605, 2
        %v607 = vadd.f32 %v605, %v606
        %v608 = vrot.slane %v607, 1
        %v609 = vadd.f32 %v607, %v608
        %v610 = vadd.f32 %v349, %v352
        %v611 = vrot.slane %v610, 4
        %v612 = vadd.f32 %v610, %v611
        %v613 = vrot.slane %v612, 2
        %v614 = vadd.f32 %v612, %v613
        %v615 = vrot.slane %v614, 1
        %v616 = vadd.f32 %v614, %v615
        %v617 = vadd.f32 %v355, %v358
        %v618 = vrot.slane %v617, 4
        %v619 = vadd.f32 %v617, %v618
        %v620 = vrot.slane %v619, 2
        %v621 = vadd.f32 %v619, %v620
        %v622 = vrot.slane %v621, 1
        %v623 = vadd.f32 %v621, %v622
        %v624 = vadd.f32 %v361, %v364
        %v625 = vrot.slane %v624, 4
        %v626 = vadd.f32 %v624, %v625
        %v627 = vrot.slane %v626, 2
        %v628 = vadd.f32 %v626, %v627
        %v629 = vrot.slane %v628, 1
        %v630 = vadd.f32 %v628, %v629
        %v631 = vadd.f32 %v367, %v370
        %v632 = vrot.slane %v631, 4
        %v633 = vadd.f32 %v631, %v632
        %v634 = vrot.slane %v633, 2
        %v635 = vadd.f32 %v633, %v634
        %v636 = vrot.slane %v635, 1
        %v637 = vadd.f32 %v635, %v636
        %v638 = vadd.f32 %v373, %v376
        %v639 = vrot.slane %v638, 4
        %v640 = vadd.f32 %v638, %v639
        %v641 = vrot.slane %v640, 2
        %v642 = vadd.f32 %v640, %v641
        %v643 = vrot.slane %v642, 1
        %v644 = vadd.f32 %v642, %v643
        %v645 = vadd.f32 %v379, %v382
        %v646 = vrot.slane %v645, 4
        %v647 = vadd.f32 %v645, %v646
        %v648 = vrot.slane %v647, 2
        %v649 = vadd.f32 %v647, %v648
        %v650 = vrot.slane %v649, 1
        %v651 = vadd.f32 %v649, %v650
        %v652 = vadd.f32 %v385, %v388
        %v653 = vrot.slane %v652, 4
        %v654 = vadd.f32 %v652, %v653
        %v655 = vrot.slane %v654, 2
        %v656 = vadd.f32 %v654, %v655
        %v657 = vrot.slane %v656, 1
        %v658 = vadd.f32 %v656, %v657
        %v659 = vadd.f32 %v391, %v394
        %v660 = vrot.slane %v659, 4
        %v661 = vadd.f32 %v659, %v660
        %v662 = vrot.slane %v661, 2
        %v663 = vadd.f32 %v661, %v662
        %v664 = vrot.slane %v663, 1
        %v665 = vadd.f32 %v663, %v664
        %v666 = vadd.f32 %v397, %v400
        %v667 = vrot.slane %v666, 4
        %v668 = vadd.f32 %v666, %v667
        %v669 = vrot.slane %v668, 2
        %v670 = vadd.f32 %v668, %v669
        %v671 = vrot.slane %v670, 1
        %v672 = vadd.f32 %v670, %v671
        %v673 = vadd.f32 %v403, %v406
        %v674 = vrot.slane %v673, 4
        %v675 = vadd.f32 %v673, %v674
        %v676 = vrot.slane %v675, 2
        %v677 = vadd.f32 %v675, %v676
        %v678 = vrot.slane %v677, 1
        %v679 = vadd.f32 %v677, %v678
        %v680 = vadd.f32 %v409, %v412
        %v681 = vrot.slane %v680, 4
        %v682 = vadd.f32 %v680, %v681
        %v683 = vrot.slane %v682, 2
        %v684 = vadd.f32 %v682, %v683
        %v685 = vrot.slane %v684, 1
        %v686 = vadd.f32 %v684, %v685
        %v687 = vadd.f32 %v415, %v418
        %v688 = vrot.slane %v687, 4
        %v689 = vadd.f32 %v687, %v688
        %v690 = vrot.slane %v689, 2
        %v691 = vadd.f32 %v689, %v690
        %v692 = vrot.slane %v691, 1
        %v693 = vadd.f32 %v691, %v692
        %v694 = vadd.f32 %v421, %v424
        %v695 = vrot.slane %v694, 4
        %v696 = vadd.f32 %v694, %v695
        %v697 = vrot.slane %v696, 2
        %v698 = vadd.f32 %v696, %v697
        %v699 = vrot.slane %v698, 1
        %v700 = vadd.f32 %v698, %v699
        %v701 = vadd.f32 %v427, %v430
        %v702 = vrot.slane %v701, 4
        %v703 = vadd.f32 %v701, %v702
        %v704 = vrot.slane %v703, 2
        %v705 = vadd.f32 %v703, %v704
        %v706 = vrot.slane %v705, 1
        %v707 = vadd.f32 %v705, %v706
        %v708 = vadd.f32 %v433, %v436
        %v709 = vrot.slane %v708, 4
        %v710 = vadd.f32 %v708, %v709
        %v711 = vrot.slane %v710, 2
        %v712 = vadd.f32 %v710, %v711
        %v713 = vrot.slane %v712, 1
        %v714 = vadd.f32 %v712, %v713
        %v715 = vadd.f32 %v439, %v442
        %v716 = vrot.slane %v715, 4
        %v717 = vadd.f32 %v715, %v716
        %v718 = vrot.slane %v717, 2
        %v719 = vadd.f32 %v717, %v718
        %v720 = vrot.slane %v719, 1
        %v721 = vadd.f32 %v719, %v720
        %v722 = vadd.f32 %v445, %v448
        %v723 = vrot.slane %v722, 4
        %v724 = vadd.f32 %v722, %v723
        %v725 = vrot.slane %v724, 2
        %v726 = vadd.f32 %v724, %v725
        %v727 = vrot.slane %v726, 1
        %v728 = vadd.f32 %v726, %v727
        %v729 = vadd.f32 %v451, %v454
        %v730 = vrot.slane %v729, 4
        %v731 = vadd.f32 %v729, %v730
        %v732 = vrot.slane %v731, 2
        %v733 = vadd.f32 %v731, %v732
        %v734 = vrot.slane %v733, 1
        %v735 = vadd.f32 %v733, %v734
        %v736 = vadd.f32 %v457, %v460
        %v737 = vrot.slane %v736, 4
        %v738 = vadd.f32 %v736, %v737
        %v739 = vrot.slane %v738, 2
        %v740 = vadd.f32 %v738, %v739
        %v741 = vrot.slane %v740, 1
        %v742 = vadd.f32 %v740, %v741
        %v743 = vadd.f32 %v463, %v466
        %v744 = vrot.slane %v743, 4
        %v745 = vadd.f32 %v743, %v744
        %v746 = vrot.slane %v745, 2
        %v747 = vadd.f32 %v745, %v746
        %v748 = vrot.slane %v747, 1
        %v749 = vadd.f32 %v747, %v748
        %v750 = vadd.f32 %v469, %v472
        %v751 = vrot.slane %v750, 4
        %v752 = vadd.f32 %v750, %v751
        %v753 = vrot.slane %v752, 2
        %v754 = vadd.f32 %v752, %v753
        %v755 = vrot.slane %v754, 1
        %v756 = vadd.f32 %v754, %v755
        %v757 = vadd.f32 %v475, %v478
        %v758 = vrot.slane %v757, 4
        %v759 = vadd.f32 %v757, %v758
        %v760 = vrot.slane %v759, 2
        %v761 = vadd.f32 %v759, %v760
        %v762 = vrot.slane %v761, 1
        %v763 = vadd.f32 %v761, %v762
        %v764 = vadd.f32 %v481, %v484
        %v765 = vrot.slane %v764, 4
        %v766 = vadd.f32 %v764, %v765
        %v767 = vrot.slane %v766, 2
        %v768 = vadd.f32 %v766, %v767
        %v769 = vrot.slane %v768, 1
        %v770 = vadd.f32 %v768, %v769
        %v771 = vadd.f32 %v487, %v490
        %v772 = vrot.slane %v771, 4
        %v773 = vadd.f32 %v771, %v772
        %v774 = vrot.slane %v773, 2
        %v775 = vadd.f32 %v773, %v774
        %v776 = vrot.slane %v775, 1
        %v777 = vadd.f32 %v775, %v776
        %v778 = vadd.f32 %v493, %v496
        %v779 = vrot.slane %v778, 4
        %v780 = vadd.f32 %v778, %v779
        %v781 = vrot.slane %v780, 2
        %v782 = vadd.f32 %v780, %v781
        %v783 = vrot.slane %v782, 1
        %v784 = vadd.f32 %v782, %v783
        %v785 = vadd.f32 %v499, %v502
        %v786 = vrot.slane %v785, 4
        %v787 = vadd.f32 %v785, %v786
        %v788 = vrot.slane %v787, 2
        %v789 = vadd.f32 %v787, %v788
        %v790 = vrot.slane %v789, 1
        %v791 = vadd.f32 %v789, %v790
        %v792 = vadd.f32 %v505, %v508
        %v793 = vrot.slane %v792, 4
        %v794 = vadd.f32 %v792, %v793
        %v795 = vrot.slane %v794, 2
        %v796 = vadd.f32 %v794, %v795
        %v797 = vrot.slane %v796, 1
        %v798 = vadd.f32 %v796, %v797
        %v799 = vmul.f32 %v581, 0.0625
        %v800 = vmul.f32 %v588, 0.0625
        %v801 = vmul.f32 %v595, 0.0625
        %v802 = vmul.f32 %v602, 0.0625
        %v803 = vmul.f32 %v609, 0.0625
        %v804 = vmul.f32 %v616, 0.0625
        %v805 = vmul.f32 %v623, 0.0625
        %v806 = vmul.f32 %v630, 0.0625
        %v807 = vmul.f32 %v637, 0.0625
        %v808 = vmul.f32 %v644, 0.0625
        %v809 = vmul.f32 %v651, 0.0625
        %v810 = vmul.f32 %v658, 0.0625
        %v811 = vmul.f32 %v665, 0.0625
        %v812 = vmul.f32 %v672, 0.0625
        %v813 = vmul.f32 %v679, 0.0625
        %v814 = vmul.f32 %v686, 0.0625
        %v815 = vmul.f32 %v693, 0.0625
        %v816 = vmul.f32 %v700, 0.0625
        %v817 = vmul.f32 %v707, 0.0625
        %v818 = vmul.f32 %v714, 0.0625
        %v819 = vmul.f32 %v721, 0.0625
        %v820 = vmul.f32 %v728, 0.0625
        %v821 = vmul.f32 %v735, 0.0625
        %v822 = vmul.f32 %v742, 0.0625
        %v823 = vmul.f32 %v749, 0.0625
        %v824 = vmul.f32 %v756, 0.0625
        %v825 = vmul.f32 %v763, 0.0625
        %v826 = vmul.f32 %v770, 0.0625
        %v827 = vmul.f32 %v777, 0.0625
        %v828 = vmul.f32 %v784, 0.0625
        %v829 = vmul.f32 %v791, 0.0625
        %v830 = vmul.f32 %v798, 0.0625
        %v895 = vlaneseq
        %v896 = vand.u32 %v895, 127
        %v897 = vperm.slane %v511, %v896
        %v898 = vadd.s32 %v896, 4294967288
        %v899 = vperm.slane %v512, %v898
        %vm900 = vcmask 130112
        %v901 = vsel %vm900, %v899, %v897
        %v902 = vperm.slane %v513, %v896
        %v903 = vperm.slane %v514, %v898
        %v904 = vsel %vm900, %v903, %v902
        %v905 = vperm.slane %v515, %v896
        %v906 = vperm.slane %v516, %v898
        %v907 = vsel %vm900, %v906, %v905
        %v908 = vperm.slane %v517, %v896
        %v909 = vperm.slane %v518, %v898
        %v910 = vsel %vm900, %v909, %v908
        %v911 = vperm.slane %v519, %v896
        %v912 = vperm.slane %v520, %v898
        %v913 = vsel %vm900, %v912, %v911
        %v914 = vperm.slane %v521, %v896
        %v915 = vperm.slane %v522, %v898
        %v916 = vsel %vm900, %v915, %v914
        %v917 = vperm.slane %v523, %v896
        %v918 = vperm.slane %v524, %v898
        %v919 = vsel %vm900, %v918, %v917
        %v920 = vperm.slane %v525, %v896
        %v921 = vperm.slane %v526, %v898
        %v922 = vsel %vm900, %v921, %v920
        %v923 = vperm.slane %v527, %v896
        %v924 = vperm.slane %v528, %v898
        %v925 = vsel %vm900, %v924, %v923
        %v926 = vperm.slane %v529, %v896
        %v927 = vperm.slane %v530, %v898
        %v928 = vsel %vm900, %v927, %v926
        %v929 = vperm.slane %v531, %v896
        %v930 = vperm.slane %v532, %v898
        %v931 = vsel %vm900, %v930, %v929
        %v932 = vperm.slane %v533, %v896
        %v933 = vperm.slane %v534, %v898
        %v934 = vsel %vm900, %v933, %v932
        %v935 = vperm.slane %v535, %v896
        %v936 = vperm.slane %v536, %v898
        %v937 = vsel %vm900, %v936, %v935
        %v938 = vperm.slane %v537, %v896
        %v939 = vperm.slane %v538, %v898
        %v940 = vsel %vm900, %v939, %v938
        %v941 = vperm.slane %v539, %v896
        %v942 = vperm.slane %v540, %v898
        %v943 = vsel %vm900, %v942, %v941
        %v944 = vperm.slane %v541, %v896
        %v945 = vperm.slane %v542, %v898
        %v946 = vsel %vm900, %v945, %v944
        %v947 = vperm.slane %v543, %v896
        %v948 = vperm.slane %v544, %v898
        %v949 = vsel %vm900, %v948, %v947
        %v950 = vperm.slane %v545, %v896
        %v951 = vperm.slane %v546, %v898
        %v952 = vsel %vm900, %v951, %v950
        %v953 = vperm.slane %v547, %v896
        %v954 = vperm.slane %v548, %v898
        %v955 = vsel %vm900, %v954, %v953
        %v956 = vperm.slane %v549, %v896
        %v957 = vperm.slane %v550, %v898
        %v958 = vsel %vm900, %v957, %v956
        %v959 = vperm.slane %v551, %v896
        %v960 = vperm.slane %v552, %v898
        %v961 = vsel %vm900, %v960, %v959
        %v962 = vperm.slane %v553, %v896
        %v963 = vperm.slane %v554, %v898
        %v964 = vsel %vm900, %v963, %v962
        %v965 = vperm.slane %v555, %v896
        %v966 = vperm.slane %v556, %v898
        %v967 = vsel %vm900, %v966, %v965
        %v968 = vperm.slane %v557, %v896
        %v969 = vperm.slane %v558, %v898
        %v970 = vsel %vm900, %v969, %v968
        %v971 = vperm.slane %v559, %v896
        %v972 = vperm.slane %v560, %v898
        %v973 = vsel %vm900, %v972, %v971
        %v974 = vperm.slane %v561, %v896
        %v975 = vperm.slane %v562, %v898
        %v976 = vsel %vm900, %v975, %v974
        %v977 = vperm.slane %v563, %v896
        %v978 = vperm.slane %v564, %v898
        %v979 = vsel %vm900, %v978, %v977
        %v980 = vperm.slane %v565, %v896
        %v981 = vperm.slane %v566, %v898
        %v982 = vsel %vm900, %v981, %v980
        %v983 = vperm.slane %v567, %v896
        %v984 = vperm.slane %v568, %v898
        %v985 = vsel %vm900, %v984, %v983
        %v986 = vperm.slane %v569, %v896
        %v987 = vperm.slane %v570, %v898
        %v988 = vsel %vm900, %v987, %v986
        %v989 = vperm.slane %v571, %v896
        %v990 = vperm.slane %v572, %v898
        %v991 = vsel %vm900, %v990, %v989
        %v992 = vperm.slane %v573, %v896
        %v993 = vperm.slane %v574, %v898
        %v994 = vsel %vm900, %v993, %v992
        %vm995 = vcmask 1041409
        %v996 = vsel %vm995, %v904, %v901
        %vm997 = vcmask 1042434
        %v998 = vsel %vm997, %v907, %v996
        %vm999 = vcmask 1043459
        %v1000 = vsel %vm999, %v910, %v998
        %vm1001 = vcmask 1044484
        %v1002 = vsel %vm1001, %v913, %v1000
        %vm1003 = vcmask 1045509
        %v1004 = vsel %vm1003, %v916, %v1002
        %vm1005 = vcmask 1046534
        %v1006 = vsel %vm1005, %v919, %v1004
        %vm1007 = vcmask 1047559
        %v1008 = vsel %vm1007, %v922, %v1006
        %v1009 = vsel %vm995, %v928, %v925
        %v1010 = vsel %vm997, %v931, %v1009
        %v1011 = vsel %vm999, %v934, %v1010
        %v1012 = vsel %vm1001, %v937, %v1011
        %v1013 = vsel %vm1003, %v940, %v1012
        %v1014 = vsel %vm1005, %v943, %v1013
        %v1015 = vsel %vm1007, %v946, %v1014
        %v1016 = vsel %vm995, %v952, %v949
        %v1017 = vsel %vm997, %v955, %v1016
        %v1018 = vsel %vm999, %v958, %v1017
        %v1019 = vsel %vm1001, %v961, %v1018
        %v1020 = vsel %vm1003, %v964, %v1019
        %v1021 = vsel %vm1005, %v967, %v1020
        %v1022 = vsel %vm1007, %v970, %v1021
        %v1023 = vsel %vm995, %v976, %v973
        %v1024 = vsel %vm997, %v979, %v1023
        %v1025 = vsel %vm999, %v982, %v1024
        %v1026 = vsel %vm1001, %v985, %v1025
        %v1027 = vsel %vm1003, %v988, %v1026
        %v1028 = vsel %vm1005, %v991, %v1027
        %v1029 = vsel %vm1007, %v994, %v1028
        %1034 = vst.msk [vmem:[#allocation2] sm:$0xff] %vm318, %v1008
        %1035 = vst.msk [vmem:[#allocation2 + $0x8] sm:$0xff] %vm318, %v1015
        %1036 = vst.msk [vmem:[#allocation2 + $0x10] sm:$0xff] %vm318, %v1022
        %1037 = vst.msk [vmem:[#allocation2 + $0x18] sm:$0xff] %vm318, %v1029
        %v1070 = vsel %vm995, %v800, %v799
        %v1071 = vsel %vm997, %v801, %v1070
        %v1072 = vsel %vm999, %v802, %v1071
        %v1073 = vsel %vm1001, %v803, %v1072
        %v1074 = vsel %vm1003, %v804, %v1073
        %v1075 = vsel %vm1005, %v805, %v1074
        %v1076 = vsel %vm1007, %v806, %v1075
        %v1077 = vsel %vm995, %v808, %v807
        %v1078 = vsel %vm997, %v809, %v1077
        %v1079 = vsel %vm999, %v810, %v1078
        %v1080 = vsel %vm1001, %v811, %v1079
        %v1081 = vsel %vm1003, %v812, %v1080
        %v1082 = vsel %vm1005, %v813, %v1081
        %v1083 = vsel %vm1007, %v814, %v1082
        %v1084 = vsel %vm995, %v816, %v815
        %v1085 = vsel %vm997, %v817, %v1084
        %v1086 = vsel %vm999, %v818, %v1085
        %v1087 = vsel %vm1001, %v819, %v1086
        %v1088 = vsel %vm1003, %v820, %v1087
        %v1089 = vsel %vm1005, %v821, %v1088
        %v1090 = vsel %vm1007, %v822, %v1089
        %v1091 = vsel %vm995, %v824, %v823
        %v1092 = vsel %vm997, %v825, %v1091
        %v1093 = vsel %vm999, %v826, %v1092
        %v1094 = vsel %vm1001, %v827, %v1093
        %v1095 = vsel %vm1003, %v828, %v1094
        %v1096 = vsel %vm1005, %v829, %v1095
        %v1097 = vsel %vm1007, %v830, %v1096
        %1098 = vrot.lane.b32.xlu0 %v1076, 16
        %v1099 = vpop.permute.xlu0 %1098
        %1100 = vrot.lane.b32.xlu0 %v1083, 16
        %v1101 = vpop.permute.xlu0 %1100
        %1102 = vrot.lane.b32.xlu0 %v1090, 16
        %v1103 = vpop.permute.xlu0 %1102
        %1104 = vrot.lane.b32.xlu0 %v1097, 16
        %v1105 = vpop.permute.xlu0 %1104
        %vm1110 = vcmask 261248
        %1111 = vst.msk [vmem:[#allocation2] sm:$0xff] %vm1110, %v1099
        %1112 = vst.msk [vmem:[#allocation2 + $0x8] sm:$0xff] %vm1110, %v1101
        %1113 = vst.msk [vmem:[#allocation2 + $0x10] sm:$0xff] %vm1110, %v1103
        %1114 = vst.msk [vmem:[#allocation2 + $0x18] sm:$0xff] %vm1110, %v1105
        %p1115 = scmp.eq.s32.totalorder %s24, 0
        // Predicated region
        $region41: #{tpu_custom_call.1} parent=39 // pred_check
          %p1116 = pneg %p1115
        $region42: #{tpu_custom_call.1} parent=39 // pred_check_branch
          %1118 = sbr.rel (%p1116) target = $region44
        $region43: #{tpu_custom_call.1} parent=39 // pred_region
          %v1119 = vld [vmem:[#allocation2] sm:$0xff]
          %v1120 = vld [vmem:[#allocation2 + $0x8] sm:$0xff]
          %v1121 = vld [vmem:[#allocation2 + $0x10] sm:$0xff]
          %v1122 = vld [vmem:[#allocation2 + $0x18] sm:$0xff]
          %v1123 = vld [vmem:[%s1] sm:$0xff]
          %v1124 = vld [vmem:[%s2] sm:$0xff]
          %1126 = vset.pattern.permute.xlu0 0
          %1127 = vperm.xlu0 %1126, %v1124
          %v1128 = vpop.permute.xlu0 %1127
          %vm1130 = vcmask 261120
          %v1132 = vsel %vm1130, %v1123, 0
          %1134 = vmatpush.msra.mxu0 0.0
          %1135 = vmatpush.msra.mxu0 0.0
          %1136 = vmatpush.msra.mxu0 0.0
          %1137 = vmatpush.msra.mxu0 0.0
          %1138 = vmatpush.msra.mxu0 0.0
          %1139 = vmatpush.msra.mxu0 0.0
          %1140 = vmatpush.msra.mxu0 0.0
          %1141 = vmatpush.msra.mxu0 0.0
          %1142 = vmatpush.msra.mxu0 0.0
          %1143 = vmatpush.msra.mxu0 0.0
          %1144 = vmatpush.msra.mxu0 0.0
          %1145 = vmatpush.msra.mxu0 0.0
          %1146 = vmatpush.msra.mxu0 %v1122
          %1147 = vmatpush.msra.mxu0 %v1121
          %1148 = vmatpush.msra.mxu0 %v1120
          %1149 = vmatpush.msra.mxu0 %v1119
          %1150 = vmatmul.f32.gmra.mxu0 %v1132
          %v1151 = vpop.f32.mrf.mxu0
          %v1152 = vadd.f32 %v1128, %v1151
          %1153 = vdwg.mxu0
          %v1154 = vld [vmem:[%s3] sm:$0xff]
          %v1155 = vld [vmem:[%s3 + $0x8] sm:$0xff]
          %v1156 = vld [vmem:[%s3 + $0x10] sm:$0xff]
          %v1157 = vld [vmem:[%s3 + $0x18] sm:$0xff]
          %v1158 = vld [vmem:[%s4] sm:$0xff]
          %v1159 = vld [vmem:[%s4 + $0x8] sm:$0xff]
          %v1160 = vld [vmem:[%s4 + $0x10] sm:$0xff]
          %v1161 = vld [vmem:[%s4 + $0x18] sm:$0xff]
          %1163 = vset.pattern.permute.xlu0 0
          %1164 = vperm.xlu0 %1163, %v1158
          %v1165 = vpop.permute.xlu0 %1164
          %1168 = vset.pattern.permute.xlu0 0
          %1169 = vperm.xlu0 %1168, %v1159
          %v1170 = vpop.permute.xlu0 %1169
          %1173 = vset.pattern.permute.xlu0 0
          %1174 = vperm.xlu0 %1173, %v1160
          %v1175 = vpop.permute.xlu0 %1174
          %1178 = vset.pattern.permute.xlu0 0
          %1179 = vperm.xlu0 %1178, %v1161
          %v1180 = vpop.permute.xlu0 %1179
          %vm1182 = vcmask 64512
          %v1184 = vsel %vm1182, %v1154, 0
          %v1187 = vsel %vm1182, %v1155, 0
          %v1190 = vsel %vm1182, %v1156, 0
          %v1193 = vsel %vm1182, %v1157, 0
          %1195 = vmatpush.msra.mxu0 0.0
          %1196 = vmatpush.msra.mxu0 0.0
          %1197 = vmatpush.msra.mxu0 0.0
          %1198 = vmatpush.msra.mxu0 0.0
          %1199 = vmatpush.msra.mxu0 0.0
          %1200 = vmatpush.msra.mxu0 0.0
          %1201 = vmatpush.msra.mxu0 0.0
          %1202 = vmatpush.msra.mxu0 0.0
          %1203 = vmatpush.msra.mxu0 0.0
          %1204 = vmatpush.msra.mxu0 0.0
          %1205 = vmatpush.msra.mxu0 0.0
          %1206 = vmatpush.msra.mxu0 0.0
          %1207 = vmatpush.msra.mxu0 0.0
          %1208 = vmatpush.msra.mxu0 0.0
          %1209 = vmatpush.msra.mxu0 0.0
          %1210 = vmatpush.msra.mxu0 %v1152
          %1211 = vmatmul.f32.gmra.mxu0 %v1184
          %v1212 = vpop.f32.mrf.mxu0
          %v1213 = vadd.f32 %v1165, %v1212
          %1214 = vmatmul.f32.gmra.mxu0 %v1187
          %v1215 = vpop.f32.mrf.mxu0
          %v1216 = vadd.f32 %v1170, %v1215
          %1217 = vmatmul.f32.gmra.mxu0 %v1190
          %v1218 = vpop.f32.mrf.mxu0
          %v1219 = vadd.f32 %v1175, %v1218
          %1220 = vmatmul.f32.gmra.mxu0 %v1193
          %v1221 = vpop.f32.mrf.mxu0
          %v1222 = vadd.f32 %v1180, %v1221
          %1223 = vdwg.mxu0
          %1224 = vst.msk [vmem:[%s242] sm:$0xff] %vm1130, %v1213
          %1225 = vst.msk [vmem:[%s242 + $0x8] sm:$0xff] %vm1130, %v1216
          %1226 = vst.msk [vmem:[%s242 + $0x10] sm:$0xff] %vm1130, %v1219
          %1227 = vst.msk [vmem:[%s242 + $0x18] sm:$0xff] %vm1130, %v1222
        $region44: #{tpu_custom_call.1} parent=39 // pred_fallthru
          _
        %s1228 = sand.u32 %s151, 1
        %s1229 = scalar_lea.sflag [#allocation4], %s1228
        %s1230 = sand.u32 %s151, 1
        %s1231 = smul.addr %s1230, 32
        %s1232 = scalar_lea.vmem [#allocation3], %s1231
        // Predicated region
        $region45: #{tpu_custom_call.1} parent=39 // pred_check
          %p1233 = pneg %p161
        $region46: #{tpu_custom_call.1} parent=39 // pred_check_branch
          %1235 = sbr.rel (%p1233) target = $region48
        $region47: #{tpu_custom_call.1} parent=39 // pred_region
          %1237 = vsyncadd %s1229, 0
          %s1238 = smul.addr %s23, 4
          %s1239 = smul.addr %s1238, 8
          %s1240 = scalar_lea.hbm %s5, %s1239
          %s1241 = sshll.u32 %s1232, 4
          %s1242 = int_to_ptr.vmem [resolvable:$true] %s1241
          %s1243 = sshll.u32 %s1240, 4
          %s1244 = int_to_ptr.hbm [resolvable:$true] %s1243
          %1249 = dma.vmem_to_hbm [thread:$0]  %s1242, 512, %s1244, %s1229, 128, 128, 8
        $region48: #{tpu_custom_call.1} parent=39 // pred_fallthru
          _
      $region40: #{tpu_custom_call.1} parent=5 // pred_fallthru
        _
      %p1250 = scmp.le.s32.totalorder 2, %s14
      // Predicated region
      $region49: #{tpu_custom_call.1} parent=5 // pred_check
        %p1251 = pneg %p1250
      $region50: #{tpu_custom_call.1} parent=5 // pred_check_branch
        %1253 = sbr.rel (%p1251) target = $region52
      $region51: #{tpu_custom_call.1} parent=5 // pred_region
        %s1254 = ssub.s32 %s14, 2
        // Predicated region
        $region53: #{tpu_custom_call.1} parent=51 // pred_check
          %p1255 = pneg %p167
        $region54: #{tpu_custom_call.1} parent=51 // pred_check_branch
          %1257 = sbr.rel (%p1255) target = $region56
        $region55: #{tpu_custom_call.1} parent=51 // pred_region
          %s1258 = sand.u32 %s152, 1
          %s1259 = scalar_lea.sflag [#allocation4], %s1258
          %s1260 = sand.u32 %s152, 1
          %s1261 = smul.addr %s1260, 32
          %s1262 = scalar_lea.vmem [#allocation3], %s1261
          %1264 = dma.done %s1259, 512
        $region56: #{tpu_custom_call.1} parent=51 // pred_fallthru
          _
      $region52: #{tpu_custom_call.1} parent=5 // pred_fallthru
        _
    $region6: #{tpu_custom_call.1} parent=1 // loop_footer
      %s18 = sadd.s32 1, %s14
    $region7: #{tpu_custom_call.1} parent=1 // loop_footer_branch
      %13 = sbr.rel target = $region3
    $region8: #{tpu_custom_call.1} parent=1 // loop_exit
      _
    %1265 = vsyncpa [#allocation4], 1
    %s1266 = scalar_lea.sflag [#allocation4], 1
    %1267 = vsyncpa %s1266, 1

</llo_original>
